<compile_context>
chip_gen: v7x
topology: tpu7x:2x2x1
jax: 0.10.0
libtpu: 0.0.40
codegen_flags: <defaults>
</compile_context>

<pallas_src>
import functools

import jax
import jax.numpy as jnp
from jax.experimental import pallas as pl
from jax.experimental.pallas import tpu as pltpu


def dense_block_kernel(x_ref, w_ref, b_ref, gamma_ref, beta_ref, mask_ref,
                       o_ref, acc_ref, *, dropout_rate, use_batch_norm,
                       training, keep_threshold):
    k = pl.program_id(1)

    # ---- K-reduction accumulator init ----
    @pl.when(k == 0)
    def _():
        acc_ref[...] = jnp.zeros_like(acc_ref)

    # ---- Linear partial product on the MXU (operands in native dtype,
    #      f32 accumulation via preferred_element_type) ----
    acc_ref[...] += jnp.dot(x_ref[...], w_ref[...],
                            preferred_element_type=jnp.float32)

    # ---- Epilogue: bias + BatchNorm + ReLU + Dropout, once per OUT tile ----
    @pl.when(k == pl.num_programs(1) - 1)
    def _():
        y = acc_ref[...] + b_ref[...].astype(jnp.float32)      # (B, tn)

        if use_batch_norm:
            # Train-mode batch statistics (biased var, eps=1e-5), computed on
            # the MXU (ones-row matmul) instead of two XLU sublane reductions.
            bsz = y.shape[0]
            ones_row = jnp.ones((1, bsz), jnp.float32)
            mean = jnp.dot(ones_row, y,
                           preferred_element_type=jnp.float32) * (1.0 / bsz)
            yc = y - mean
            var = jnp.dot(ones_row, yc * yc,
                          preferred_element_type=jnp.float32) * (1.0 / bsz)
            y = yc * jax.lax.rsqrt(var + 1e-5)
            y = (gamma_ref[...].astype(jnp.float32) * y
                 + beta_ref[...].astype(jnp.float32))
            # TODO(synk): running_mean / running_var updates (and eval-mode
            # normalization with running stats) are not implemented here.

        # Activation (ReLU).
        y = jnp.maximum(y, 0.0)

        # Inverted dropout via integer threshold compare on pre-generated bits.
        # TODO(synk): PyTorch's dropout RNG stream cannot be reproduced
        # bit-for-bit; only the Bernoulli(keep_prob) + 1/keep_prob scaling
        # semantics are reproduced.
        if training and dropout_rate > 0.0:
            keep = mask_ref[...] < jnp.uint32(keep_threshold)
            y = jnp.where(keep, y * (1.0 / (1.0 - dropout_rate)), 0.0)

        o_ref[...] = y.astype(o_ref.dtype)


def _pick_tile(dim, candidates):
    for c in candidates:
        if dim % c == 0:
            return c
    return dim


def dense_block(x, w, b, gamma, beta, dropout_mask, *, dropout_rate=0.1,
                use_batch_norm=True, training=True):
    B, IN = x.shape
    OUT = w.shape[1]

    # Tile sizes: lane (OUT) tile 128/256/512, K tile up to 1024. Sized so that
    # double-buffered x/w tiles + output + f32 accumulator stay well under the
    # 32 MiB scoped-VMEM budget (safe on v7x's 64 MiB physical VMEM as well).
    tn = _pick_tile(OUT, (512, 256, 128))
    tk = _pick_tile(IN, (1024, 512, 256, 128))
    grid = (OUT // tn, IN // tk)

    keep_prob = 1.0 - dropout_rate
    keep_threshold = min(2**32 - 1, int(round(keep_prob * 2**32)))

    kernel = functools.partial(
        dense_block_kernel,
        dropout_rate=dropout_rate,
        use_batch_norm=use_batch_norm,
        training=training,
        keep_threshold=keep_threshold,
    )

    return pl.pallas_call(
        kernel,
        out_shape=jax.ShapeDtypeStruct((B, OUT), x.dtype),
        grid_spec=pltpu.PrefetchScalarGridSpec(
            num_scalar_prefetch=0,
            grid=grid,
            in_specs=[
                pl.BlockSpec((B, tk), lambda j, k: (0, k)),   # x
                pl.BlockSpec((tk, tn), lambda j, k: (k, j)),  # w (pre-transposed)
                pl.BlockSpec((1, tn), lambda j, k: (0, j)),   # bias
                pl.BlockSpec((1, tn), lambda j, k: (0, j)),   # gamma
                pl.BlockSpec((1, tn), lambda j, k: (0, j)),   # beta
                pl.BlockSpec((B, tn), lambda j, k: (0, j)),   # dropout bits
            ],
            out_specs=pl.BlockSpec((B, tn), lambda j, k: (0, j)),
            scratch_shapes=[pltpu.VMEM((B, tn), jnp.float32)],
        ),
        compiler_params=pltpu.CompilerParams(
            dimension_semantics=("parallel", "arbitrary"),
            vmem_limit_bytes=32 * 1024 * 1024,
        ),
    )(x, w, b, gamma, beta, dropout_mask)


if __name__ == "__main__":
    # Small shapes consistent with the module's forward: x is [batch, in_size].
    B, IN, OUT = 8, 32, 128
    key = jax.random.PRNGKey(0)
    kx, kw, kb, kd = jax.random.split(key, 4)

    x = jax.random.normal(kx, (B, IN), dtype=jnp.float32)

    # Deterministic parameter init mirroring nn.Linear defaults:
    # U(-1/sqrt(in_size), 1/sqrt(in_size)) for weight and bias.
    bound = 1.0 / (IN ** 0.5)
    # PyTorch weight is (OUT, IN); stored pre-transposed as (IN, OUT).
    w = jax.random.uniform(kw, (IN, OUT), dtype=jnp.float32,
                           minval=-bound, maxval=bound)
    b = jax.random.uniform(kb, (1, OUT), dtype=jnp.float32,
                           minval=-bound, maxval=bound)
    # BatchNorm1d affine params: weight=1, bias=0 (PyTorch default init).
    gamma = jnp.ones((1, OUT), dtype=jnp.float32)
    beta = jnp.zeros((1, OUT), dtype=jnp.float32)

    # Dropout random bits (one uint32 per output element).
    dropout_mask = jax.random.bits(kd, (B, OUT), dtype=jnp.uint32)

    out = dense_block(x, w, b, gamma, beta, dropout_mask,
                      dropout_rate=0.1, use_batch_norm=True, training=True)
    jax.block_until_ready(out)

    assert out.shape == (B, OUT)
    assert bool(jnp.all(jnp.isfinite(out)))
    print("KERNEL_OK")
</pallas_src>

<mosaic_0001>
module attributes {stable_mosaic.version = 11 : i64} {
  func.func @dense_block_kernel(%arg0: i32, %arg1: i32, %arg2: memref<8x32xf32, #tpu.memory_space<vmem>>, %arg3: memref<32x128xf32, #tpu.memory_space<vmem>>, %arg4: memref<1x128xf32, #tpu.memory_space<vmem>>, %arg5: memref<1x128xf32, #tpu.memory_space<vmem>>, %arg6: memref<1x128xf32, #tpu.memory_space<vmem>>, %arg7: memref<8x128xi32, #tpu.memory_space<vmem>>, %arg8: memref<8x128xf32, #tpu.memory_space<vmem>>, %arg9: memref<8x128xf32, #tpu.memory_space<vmem>>) attributes {dimension_semantics = [#tpu.dimension_semantics<parallel>, #tpu.dimension_semantics<arbitrary>], iteration_bounds = array<i64: 1, 1>, scalar_prefetch = 0 : i64, scratch_operands = 1 : i64, tpu.core_type = #tpu.core_type<tc>, window_params = [{transform_indices = @transform_0, window_bounds = array<i64: 8, 32>}, {transform_indices = @transform_1, window_bounds = array<i64: 32, 128>}, {transform_indices = @transform_2, window_bounds = array<i64: 1, 128>}, {transform_indices = @transform_3, window_bounds = array<i64: 1, 128>}, {transform_indices = @transform_4, window_bounds = array<i64: 1, 128>}, {transform_indices = @transform_5, window_bounds = array<i64: 8, 128>}, {transform_indices = @transform_6, window_bounds = array<i64: 8, 128>}]} {
    %c0_i32 = arith.constant 0 : i32
    %0 = arith.cmpi eq, %arg1, %c0_i32 : i32
    %1 = arith.extui %0 : i1 to i32
    %c0_i32_0 = arith.constant 0 : i32
    %2 = arith.cmpi ne, %1, %c0_i32_0 : i32
    scf.if %2 {
      %cst_10 = arith.constant 0.000000e+00 : f32
      %12 = vector.broadcast %cst_10 : f32 to vector<8x128xf32>
      %c0_11 = arith.constant 0 : index
      %c0_12 = arith.constant 0 : index
      %13 = vector.load %arg9[%c0_11, %c0_12] : memref<8x128xf32, #tpu.memory_space<vmem>>, vector<8x128xf32>
      tpu.vector_store %arg9[%c0_11, %c0_12], %12 {strides = array<i32>} : memref<8x128xf32, #tpu.memory_space<vmem>>, vector<8x128xf32>,
    } else {
    }
    %c0 = arith.constant 0 : index
    %c0_1 = arith.constant 0 : index
    %3 = vector.load %arg9[%c0, %c0_1] : memref<8x128xf32, #tpu.memory_space<vmem>>, vector<8x128xf32>
    %c0_2 = arith.constant 0 : index
    %c0_3 = arith.constant 0 : index
    %4 = vector.load %arg2[%c0_2, %c0_3] : memref<8x32xf32, #tpu.memory_space<vmem>>, vector<8x32xf32>
    %c0_4 = arith.constant 0 : index
    %c0_5 = arith.constant 0 : index
    %5 = vector.load %arg3[%c0_4, %c0_5] : memref<32x128xf32, #tpu.memory_space<vmem>>, vector<32x128xf32>
    %cst = arith.constant dense<0.000000e+00> : vector<8x128xf32>
    %6 = tpu.matmul %4, %5, %cst {dimension_numbers = #tpu.dot_dimension_numbers<[1], [0], [0], [1], [0, 0, 1, 1], [], []>} : vector<8x32xf32>, vector<32x128xf32>, vector<8x128xf32> -> vector<8x128xf32>
    %7 = arith.addf %3, %6 : vector<8x128xf32>
    %c0_6 = arith.constant 0 : index
    %c0_7 = arith.constant 0 : index
    %8 = vector.load %arg9[%c0_6, %c0_7] : memref<8x128xf32, #tpu.memory_space<vmem>>, vector<8x128xf32>
    tpu.vector_store %arg9[%c0_6, %c0_7], %7 {strides = array<i32>} : memref<8x128xf32, #tpu.memory_space<vmem>>, vector<8x128xf32>,
    %c0_i32_8 = arith.constant 0 : i32
    %9 = arith.cmpi eq, %arg1, %c0_i32_8 : i32
    %10 = arith.extui %9 : i1 to i32
    %c0_i32_9 = arith.constant 0 : i32
    %11 = arith.cmpi ne, %10, %c0_i32_9 : i32
    scf.if %11 {
      %c0_10 = arith.constant 0 : index
      %c0_11 = arith.constant 0 : index
      %12 = vector.load %arg9[%c0_10, %c0_11] : memref<8x128xf32, #tpu.memory_space<vmem>>, vector<8x128xf32>
      %c0_12 = arith.constant 0 : index
      %c0_13 = arith.constant 0 : index
      %13 = vector.load %arg4[%c0_12, %c0_13] : memref<1x128xf32, #tpu.memory_space<vmem>>, vector<1x128xf32>
      %14 = vector.broadcast %13 : vector<1x128xf32> to vector<8x128xf32>
      %15 = arith.addf %12, %14 : vector<8x128xf32>
      %cst_14 = arith.constant 1.000000e+00 : f32
      %16 = vector.broadcast %cst_14 : f32 to vector<1x8xf32>
      %cst_15 = arith.constant dense<0.000000e+00> : vector<1x128xf32>
      %17 = tpu.matmul %16, %15, %cst_15 {dimension_numbers = #tpu.dot_dimension_numbers<[1], [0], [0], [1], [0, 0, 1, 1], [], []>} : vector<1x8xf32>, vector<8x128xf32>, vector<1x128xf32> -> vector<1x128xf32>
      %cst_16 = arith.constant 1.250000e-01 : f32
      %18 = vector.broadcast %cst_16 : f32 to vector<1x128xf32>
      %19 = arith.mulf %17, %18 : vector<1x128xf32>
      %20 = vector.broadcast %19 : vector<1x128xf32> to vector<8x128xf32>
      %21 = arith.subf %15, %20 : vector<8x128xf32>
      %22 = arith.mulf %21, %21 : vector<8x128xf32>
      %cst_17 = arith.constant dense<0.000000e+00> : vector<1x128xf32>
      %23 = tpu.matmul %16, %22, %cst_17 {dimension_numbers = #tpu.dot_dimension_numbers<[1], [0], [0], [1], [0, 0, 1, 1], [], []>} : vector<1x8xf32>, vector<8x128xf32>, vector<1x128xf32> -> vector<1x128xf32>
      %cst_18 = arith.constant 1.250000e-01 : f32
      %24 = vector.broadcast %cst_18 : f32 to vector<1x128xf32>
      %25 = arith.mulf %23, %24 : vector<1x128xf32>
      %cst_19 = arith.constant 9.99999974E-6 : f32
      %26 = vector.broadcast %cst_19 : f32 to vector<1x128xf32>
      %27 = arith.addf %25, %26 : vector<1x128xf32>
      %28 = math.rsqrt %27 : vector<1x128xf32>
      %29 = vector.broadcast %28 : vector<1x128xf32> to vector<8x128xf32>
      %30 = arith.mulf %21, %29 : vector<8x128xf32>
      %c0_20 = arith.constant 0 : index
      %c0_21 = arith.constant 0 : index
      %31 = vector.load %arg5[%c0_20, %c0_21] : memref<1x128xf32, #tpu.memory_space<vmem>>, vector<1x128xf32>
      %32 = vector.broadcast %31 : vector<1x128xf32> to vector<8x128xf32>
      %33 = arith.mulf %32, %30 : vector<8x128xf32>
      %c0_22 = arith.constant 0 : index
      %c0_23 = arith.constant 0 : index
      %34 = vector.load %arg6[%c0_22, %c0_23] : memref<1x128xf32, #tpu.memory_space<vmem>>, vector<1x128xf32>
      %35 = vector.broadcast %34 : vector<1x128xf32> to vector<8x128xf32>
      %36 = arith.addf %33, %35 : vector<8x128xf32>
      %cst_24 = arith.constant 0.000000e+00 : f32
      %37 = vector.broadcast %cst_24 : f32 to vector<8x128xf32>
      %38 = arith.maximumf %36, %37 : vector<8x128xf32>
      %c0_25 = arith.constant 0 : index
      %c0_26 = arith.constant 0 : index
      %39 = vector.load %arg7[%c0_25, %c0_26] : memref<8x128xi32, #tpu.memory_space<vmem>>, vector<8x128xi32>
      %c-429496730_i32 = arith.constant -429496730 : i32
      %40 = vector.broadcast %c-429496730_i32 : i32 to vector<8x128xi32>
      %41 = arith.cmpi ult, %39, %40 : vector<8x128xi32>
      %cst_27 = arith.constant 1.11111116 : f32
      %42 = vector.broadcast %cst_27 : f32 to vector<8x128xf32>
      %43 = arith.mulf %38, %42 : vector<8x128xf32>
      %cst_28 = arith.constant 0.000000e+00 : f32
      %44 = vector.broadcast %cst_28 : f32 to vector<8x128xf32>
      %45 = arith.select %41, %43, %44 : vector<8x128xi1>, vector<8x128xf32>
      %c0_29 = arith.constant 0 : index
      %c0_30 = arith.constant 0 : index
      %46 = vector.load %arg8[%c0_29, %c0_30] : memref<8x128xf32, #tpu.memory_space<vmem>>, vector<8x128xf32>
      tpu.vector_store %arg8[%c0_29, %c0_30], %45 {strides = array<i32>} : memref<8x128xf32, #tpu.memory_space<vmem>>, vector<8x128xf32>,
    } else {
    }
    return
  }
  func.func @transform_0(%arg0: i32, %arg1: i32) -> (i32, i32) {
    %c0_i32 = arith.constant 0 : i32
    %c0_i32_0 = arith.constant 0 : i32
    return %c0_i32, %arg1 : i32, i32
  }
  func.func @transform_1(%arg0: i32, %arg1: i32) -> (i32, i32) {
    %c0_i32 = arith.constant 0 : i32
    return %arg1, %arg0 : i32, i32
  }
  func.func @transform_2(%arg0: i32, %arg1: i32) -> (i32, i32) {
    %c0_i32 = arith.constant 0 : i32
    %c0_i32_0 = arith.constant 0 : i32
    return %c0_i32, %arg0 : i32, i32
  }
  func.func @transform_3(%arg0: i32, %arg1: i32) -> (i32, i32) {
    %c0_i32 = arith.constant 0 : i32
    %c0_i32_0 = arith.constant 0 : i32
    return %c0_i32, %arg0 : i32, i32
  }
  func.func @transform_4(%arg0: i32, %arg1: i32) -> (i32, i32) {
    %c0_i32 = arith.constant 0 : i32
    %c0_i32_0 = arith.constant 0 : i32
    return %c0_i32, %arg0 : i32, i32
  }
  func.func @transform_5(%arg0: i32, %arg1: i32) -> (i32, i32) {
    %c0_i32 = arith.constant 0 : i32
    %c0_i32_0 = arith.constant 0 : i32
    return %c0_i32, %arg0 : i32, i32
  }
  func.func @transform_6(%arg0: i32, %arg1: i32) -> (i32, i32) {
    %c0_i32 = arith.constant 0 : i32
    %c0_i32_0 = arith.constant 0 : i32
    return %c0_i32, %arg0 : i32, i32
  }
}

</mosaic_0001>

<llo_original>
// kernel: tpu_custom_call.1
$region0: #{tpu_custom_call.1}
  #allocation0 [shape = 'u32[]', space=smem, size = 0x4, offset = 0x4, fixed_abs, tag = 'smem constant byte address 0x4 - core index']
  #allocation1 [shape = 'u32[144,128]{1,0:T(1,128)}', space=vmem, size = 0x12000, scoped, tag = 'internal scratch']
  #allocation2 [shape = 'f32[8,128]{1,0:T(8,128)}', space=vmem, size = 0x1000, scoped, tag = 'scratch operand']
  %s0 = inlined_call_operand.hbm [shape: f32[8,32], index: 0, kind: input, shape index: {}]
  %s1 = inlined_call_operand.hbm [shape: f32[32,128], index: 1, kind: input, shape index: {}]
  %s2 = inlined_call_operand.vmem [shape: f32[1,128], index: 2, kind: input, shape index: {}]
  %s3 = inlined_call_operand.vmem [shape: f32[1,128], index: 3, kind: input, shape index: {}]
  %s4 = inlined_call_operand.vmem [shape: f32[1,128], index: 4, kind: input, shape index: {}]
  %s5 = inlined_call_operand.vmem [shape: u32[8,128], index: 5, kind: input, shape index: {}]
  %s6 = inlined_call_operand.hbm [shape: f32[8,128], index: 6, kind: output, shape index: {}]
  %s7 = sld [smem:[#allocation0]]
  $region50: #{tpu_custom_call.1} parent=0
    _
  %s9 = ssub.s32 1, %s7
  %s10 = scalar_select 0, %s9, %s7
  $region1: #{tpu_custom_call.1} parent=0
    #allocation3 [shape = 'u8[4096]{0}', space=vmem, size = 0x1000, scoped, tag = 'input window, operand 0, single buffered']
    #allocation4 [shape = 's32[1]{0}', space=sflag, size = 0x4, scoped, tag = 'scoped memory for tpu_custom_call.1']
    #allocation5 [shape = 's32[1]{0}', space=sflag, size = 0x4, scoped, tag = 'scoped memory for tpu_custom_call.1']
    #allocation6 [shape = 'u8[16384]{0}', space=vmem, size = 0x4000, scoped, tag = 'input window, operand 1, single buffered']
    #allocation7 [shape = 's32[1]{0}', space=sflag, size = 0x4, scoped, tag = 'scoped memory for tpu_custom_call.1']
    #allocation8 [shape = 'u8[4096]{0}', space=vmem, size = 0x1000, scoped, tag = 'output window, operand 0, single buffered']
    %11 = vsyncpa [#allocation4], 0
    %12 = vsyncpa [#allocation7], 0
    %13 = vsyncpa [#allocation5], 0
    // Predicated region
    $region2: #{tpu_custom_call.1} parent=1 // pred_check
      _
    $region3: #{tpu_custom_call.1} parent=1 // pred_check_branch
      %15 = sbr.rel (0) target = $region5
    $region4: #{tpu_custom_call.1} parent=1 // pred_region
      %s17 = ssub.s32 128, 128
      %18 = vsyncadd [#allocation4], %s17
      %s20 = sshll.u32 [#allocation3], 4
      %s21 = int_to_ptr.vmem [resolvable:$true] %s20
      %23 = dma.hbm_to_vmem [thread:$0]  %s0, 128, %s21, [#allocation4]
    $region5: #{tpu_custom_call.1} parent=1 // pred_fallthru
      _
    // Predicated region
    $region6: #{tpu_custom_call.1} parent=1 // pred_check
      _
    $region7: #{tpu_custom_call.1} parent=1 // pred_check_branch
      %25 = sbr.rel (0) target = $region9
    $region8: #{tpu_custom_call.1} parent=1 // pred_region
      %s27 = ssub.s32 512, 512
      %28 = vsyncadd [#allocation7], %s27
      %s29 = sshll.u32 [#allocation6], 4
      %s30 = int_to_ptr.vmem [resolvable:$true] %s29
      %35 = dma.hbm_to_vmem [thread:$0]  %s1, 512, %s30, [#allocation7], 128, 128, 8
    $region9: #{tpu_custom_call.1} parent=1 // pred_fallthru
      _
    // Predicated region
    $region10: #{tpu_custom_call.1} parent=1 // pred_check
      _
    $region11: #{tpu_custom_call.1} parent=1 // pred_check_branch
      %37 = sbr.rel (0) target = $region13
    $region12: #{tpu_custom_call.1} parent=1 // pred_region
      _
    $region13: #{tpu_custom_call.1} parent=1 // pred_fallthru
      _
    // Predicated region
    $region14: #{tpu_custom_call.1} parent=1 // pred_check
      _
    $region15: #{tpu_custom_call.1} parent=1 // pred_check_branch
      %39 = sbr.rel (0) target = $region17
    $region16: #{tpu_custom_call.1} parent=1 // pred_region
      _
    $region17: #{tpu_custom_call.1} parent=1 // pred_fallthru
      _
    // Predicated region
    $region18: #{tpu_custom_call.1} parent=1 // pred_check
      _
    $region19: #{tpu_custom_call.1} parent=1 // pred_check_branch
      %41 = sbr.rel (0) target = $region21
    $region20: #{tpu_custom_call.1} parent=1 // pred_region
      _
    $region21: #{tpu_custom_call.1} parent=1 // pred_fallthru
      _
    // Predicated region
    $region22: #{tpu_custom_call.1} parent=1 // pred_check
      _
    $region23: #{tpu_custom_call.1} parent=1 // pred_check_branch
      %43 = sbr.rel (0) target = $region25
    $region24: #{tpu_custom_call.1} parent=1 // pred_region
      _
    $region25: #{tpu_custom_call.1} parent=1 // pred_fallthru
      _
    // Predicated region
    $region26: #{tpu_custom_call.1} parent=1 // pred_check
      _
    $region27: #{tpu_custom_call.1} parent=1 // pred_check_branch
      %45 = sbr.rel (0) target = $region29
    $region28: #{tpu_custom_call.1} parent=1 // pred_region
      %46 = dma.done [#allocation4], 128
    $region29: #{tpu_custom_call.1} parent=1 // pred_fallthru
      _
    // Predicated region
    $region30: #{tpu_custom_call.1} parent=1 // pred_check
      _
    $region31: #{tpu_custom_call.1} parent=1 // pred_check_branch
      %48 = sbr.rel (0) target = $region33
    $region32: #{tpu_custom_call.1} parent=1 // pred_region
      %49 = dma.done [#allocation7], 512
    $region33: #{tpu_custom_call.1} parent=1 // pred_fallthru
      _
    %p50 = scmp.eq.s32.totalorder 0, 0
    // Predicated region
    $region34: #{tpu_custom_call.1} parent=1 // pred_check
      %p51 = pneg %p50
    $region35: #{tpu_custom_call.1} parent=1 // pred_check_branch
      %53 = sbr.rel (%p51) target = $region37
    $region36: #{tpu_custom_call.1} parent=1 // pred_region
      %54 = vst [vmem:[#allocation2] sm:$0xff] 0.0
    $region37: #{tpu_custom_call.1} parent=1 // pred_fallthru
      _
    %v55 = vld [vmem:[#allocation2] sm:$0xff]
    %v56 = vld [vmem:[#allocation3] sm:$0xff]
    %v57 = vld [vmem:[#allocation6] sm:$0xff]
    %v58 = vld [vmem:[#allocation6 + $0x8] sm:$0xff]
    %v59 = vld [vmem:[#allocation6 + $0x10] sm:$0xff]
    %v60 = vld [vmem:[#allocation6 + $0x18] sm:$0xff]
    %vm61 = vcmask 261120
    %v63 = vsel %vm61, %v56, 0
    %65 = vmatprep.subr.mxu0 0.0
    %66 = vmatpush1.msra.mxu0 %v57
    %67 = vmatprep.subr.mxu0 0.0
    %68 = vmatpush1.msra.mxu0 %v58
    %69 = vmatprep.subr.mxu0 0.0
    %70 = vmatpush1.msra.mxu0 %v59
    %71 = vmatprep.subr.mxu0 0.0
    %72 = vmatpush1.msra.mxu0 %v60
    %73 = vmatprep.subr.mxu0 0.0
    %74 = vmatpush1.msra.mxu0 0.0
    %75 = vmatprep.subr.mxu0 0.0
    %76 = vmatpush1.msra.mxu0 0.0
    %77 = vmatprep.subr.mxu0 0.0
    %78 = vmatpush1.msra.mxu0 0.0
    %79 = vmatprep.subr.mxu0 0.0
    %80 = vmatpush1.msra.mxu0 0.0
    %81 = vmatprep.subr.mxu0 0.0
    %82 = vmatpush1.msra.mxu0 0.0
    %83 = vmatprep.subr.mxu0 0.0
    %84 = vmatpush1.msra.mxu0 0.0
    %85 = vmatprep.subr.mxu0 0.0
    %86 = vmatpush1.msra.mxu0 0.0
    %87 = vmatprep.subr.mxu0 0.0
    %88 = vmatpush1.msra.mxu0 0.0
    %89 = vmatprep.subr.mxu0 0.0
    %90 = vmatpush1.msra.mxu0 0.0
    %91 = vmatprep.subr.mxu0 0.0
    %92 = vmatpush1.msra.mxu0 0.0
    %93 = vmatprep.subr.mxu0 0.0
    %94 = vmatpush1.msra.mxu0 0.0
    %95 = vmatprep.subr.mxu0 0.0
    %96 = vmatpush1.msra.mxu0 0.0
    %97 = vmatprep.subr.mxu0 0.0
    %98 = vmatpush1.msra.mxu0 0.0
    %99 = vmatprep.subr.mxu0 0.0
    %100 = vmatpush1.msra.mxu0 0.0
    %101 = vmatprep.subr.mxu0 0.0
    %102 = vmatpush1.msra.mxu0 0.0
    %103 = vmatprep.subr.mxu0 0.0
    %104 = vmatpush1.msra.mxu0 0.0
    %105 = vmatprep.subr.mxu0 0.0
    %106 = vmatpush1.msra.mxu0 0.0
    %107 = vmatprep.subr.mxu0 0.0
    %108 = vmatpush1.msra.mxu0 0.0
    %109 = vmatprep.subr.mxu0 0.0
    %110 = vmatpush1.msra.mxu0 0.0
    %111 = vmatprep.subr.mxu0 0.0
    %112 = vmatpush1.msra.mxu0 0.0
    %113 = vmatprep.subr.mxu0 0.0
    %114 = vmatpush1.msra.mxu0 0.0
    %115 = vmatprep.subr.mxu0 0.0
    %116 = vmatpush1.msra.mxu0 0.0
    %117 = vmatprep.subr.mxu0 0.0
    %118 = vmatpush1.msra.mxu0 0.0
    %119 = vmatprep.subr.mxu0 0.0
    %120 = vmatpush1.msra.mxu0 0.0
    %121 = vmatprep.subr.mxu0 0.0
    %122 = vmatpush1.msra.mxu0 0.0
    %123 = vmatprep.subr.mxu0 0.0
    %124 = vmatpush1.msra.mxu0 0.0
    %125 = vmatprep.subr.mxu0 0.0
    %126 = vmatpush1.msra.mxu0 0.0
    %127 = vmatprep.subr.mxu0 0.0
    %128 = vmatpush1.msra.mxu0 0.0
    %129 = vmatprep.mubr.f32.mxu0 0.0
    %130 = vmatmul.mubr.f32.gmra.mrb[0].mxu0 %v63
    %v131 = vpop.f32.mrb[0].mxu0
    %v132 = vadd.f32 0.0, %v131
    %v133 = vpop.f32.mrb[0].mxu0
    %134 = vdwg.mxu0
    %v135 = vadd.f32 %v55, %v132
    %136 = vst [vmem:[#allocation2] sm:$0xff] %v135
    // Predicated region
    $region38: #{tpu_custom_call.1} parent=1 // pred_check
      %p137 = pneg %p50
    $region39: #{tpu_custom_call.1} parent=1 // pred_check_branch
      %139 = sbr.rel (%p137) target = $region41
    $region40: #{tpu_custom_call.1} parent=1 // pred_region
      %v140 = vld [vmem:[#allocation2] sm:$0xff]
      %v141 = vld [vmem:[%s2] sm:$0x1]
      %v143 = vlaneseq
      %v144 = vshrl.u32 %v143, 7
      %v145 = vsub.s32 0, %v144
      %v146 = vrot.slane %v141, %v145
      %v148 = vadd.f32 %v140, %v146
      %vm149 = vcmask 64512
      %v151 = vsel %vm149, 1.0, 0
      %153 = vmatprep.subr.mxu0 0.0
      %154 = vmatpush1.msra.mxu0 %v148
      %155 = vmatprep.subr.mxu0 0.0
      %156 = vmatpush1.msra.mxu0 0.0
      %157 = vmatprep.subr.mxu0 0.0
      %158 = vmatpush1.msra.mxu0 0.0
      %159 = vmatprep.subr.mxu0 0.0
      %160 = vmatpush1.msra.mxu0 0.0
      %161 = vmatprep.subr.mxu0 0.0
      %162 = vmatpush1.msra.mxu0 0.0
      %163 = vmatprep.subr.mxu0 0.0
      %164 = vmatpush1.msra.mxu0 0.0
      %165 = vmatprep.subr.mxu0 0.0
      %166 = vmatpush1.msra.mxu0 0.0
      %167 = vmatprep.subr.mxu0 0.0
      %168 = vmatpush1.msra.mxu0 0.0
      %169 = vmatprep.subr.mxu0 0.0
      %170 = vmatpush1.msra.mxu0 0.0
      %171 = vmatprep.subr.mxu0 0.0
      %172 = vmatpush1.msra.mxu0 0.0
      %173 = vmatprep.subr.mxu0 0.0
      %174 = vmatpush1.msra.mxu0 0.0
      %175 = vmatprep.subr.mxu0 0.0
      %176 = vmatpush1.msra.mxu0 0.0
      %177 = vmatprep.subr.mxu0 0.0
      %178 = vmatpush1.msra.mxu0 0.0
      %179 = vmatprep.subr.mxu0 0.0
      %180 = vmatpush1.msra.mxu0 0.0
      %181 = vmatprep.subr.mxu0 0.0
      %182 = vmatpush1.msra.mxu0 0.0
      %183 = vmatprep.subr.mxu0 0.0
      %184 = vmatpush1.msra.mxu0 0.0
      %185 = vmatprep.subr.mxu0 0.0
      %186 = vmatpush1.msra.mxu0 0.0
      %187 = vmatprep.subr.mxu0 0.0
      %188 = vmatpush1.msra.mxu0 0.0
      %189 = vmatprep.subr.mxu0 0.0
      %190 = vmatpush1.msra.mxu0 0.0
      %191 = vmatprep.subr.mxu0 0.0
      %192 = vmatpush1.msra.mxu0 0.0
      %193 = vmatprep.subr.mxu0 0.0
      %194 = vmatpush1.msra.mxu0 0.0
      %195 = vmatprep.subr.mxu0 0.0
      %196 = vmatpush1.msra.mxu0 0.0
      %197 = vmatprep.subr.mxu0 0.0
      %198 = vmatpush1.msra.mxu0 0.0
      %199 = vmatprep.subr.mxu0 0.0
      %200 = vmatpush1.msra.mxu0 0.0
      %201 = vmatprep.subr.mxu0 0.0
      %202 = vmatpush1.msra.mxu0 0.0
      %203 = vmatprep.subr.mxu0 0.0
      %204 = vmatpush1.msra.mxu0 0.0
      %205 = vmatprep.subr.mxu0 0.0
      %206 = vmatpush1.msra.mxu0 0.0
      %207 = vmatprep.subr.mxu0 0.0
      %208 = vmatpush1.msra.mxu0 0.0
      %209 = vmatprep.subr.mxu0 0.0
      %210 = vmatpush1.msra.mxu0 0.0
      %211 = vmatprep.subr.mxu0 0.0
      %212 = vmatpush1.msra.mxu0 0.0
      %213 = vmatprep.subr.mxu0 0.0
      %214 = vmatpush1.msra.mxu0 0.0
      %215 = vmatprep.subr.mxu0 0.0
      %216 = vmatpush1.msra.mxu0 0.0
      %217 = vmatprep.mubr.f32.mxu0 0.0
      %218 = vmatmul.mubr.f32.gmra.mrb[0].mxu0 %v151
      %v219 = vpop.f32.mrb[0].mxu0
      %v220 = vadd.f32 0.0, %v219
      %v221 = vpop.f32.mrb[0].mxu0
      %222 = vdwg.mxu0
      %v223 = vmul.f32 %v220, 0.125
      %v224 = vlaneseq
      %v225 = vshrl.u32 %v224, 7
      %v226 = vsub.s32 0, %v225
      %v227 = vrot.slane %v223, %v226
      %v228 = vsub.f32 %v148, %v227
      %v229 = vmul.f32 %v228, %v228
      %230 = vmatprep.subr.mxu0 0.0
      %231 = vmatpush1.msra.mxu0 %v229
      %232 = vmatprep.subr.mxu0 0.0
      %233 = vmatpush1.msra.mxu0 0.0
      %234 = vmatprep.subr.mxu0 0.0
      %235 = vmatpush1.msra.mxu0 0.0
      %236 = vmatprep.subr.mxu0 0.0
      %237 = vmatpush1.msra.mxu0 0.0
      %238 = vmatprep.subr.mxu0 0.0
      %239 = vmatpush1.msra.mxu0 0.0
      %240 = vmatprep.subr.mxu0 0.0
      %241 = vmatpush1.msra.mxu0 0.0
      %242 = vmatprep.subr.mxu0 0.0
      %243 = vmatpush1.msra.mxu0 0.0
      %244 = vmatprep.subr.mxu0 0.0
      %245 = vmatpush1.msra.mxu0 0.0
      %246 = vmatprep.subr.mxu0 0.0
      %247 = vmatpush1.msra.mxu0 0.0
      %248 = vmatprep.subr.mxu0 0.0
      %249 = vmatpush1.msra.mxu0 0.0
      %250 = vmatprep.subr.mxu0 0.0
      %251 = vmatpush1.msra.mxu0 0.0
      %252 = vmatprep.subr.mxu0 0.0
      %253 = vmatpush1.msra.mxu0 0.0
      %254 = vmatprep.subr.mxu0 0.0
      %255 = vmatpush1.msra.mxu0 0.0
      %256 = vmatprep.subr.mxu0 0.0
      %257 = vmatpush1.msra.mxu0 0.0
      %258 = vmatprep.subr.mxu0 0.0
      %259 = vmatpush1.msra.mxu0 0.0
      %260 = vmatprep.subr.mxu0 0.0
      %261 = vmatpush1.msra.mxu0 0.0
      %262 = vmatprep.subr.mxu0 0.0
      %263 = vmatpush1.msra.mxu0 0.0
      %264 = vmatprep.subr.mxu0 0.0
      %265 = vmatpush1.msra.mxu0 0.0
      %266 = vmatprep.subr.mxu0 0.0
      %267 = vmatpush1.msra.mxu0 0.0
      %268 = vmatprep.subr.mxu0 0.0
      %269 = vmatpush1.msra.mxu0 0.0
      %270 = vmatprep.subr.mxu0 0.0
      %271 = vmatpush1.msra.mxu0 0.0
      %272 = vmatprep.subr.mxu0 0.0
      %273 = vmatpush1.msra.mxu0 0.0
      %274 = vmatprep.subr.mxu0 0.0
      %275 = vmatpush1.msra.mxu0 0.0
      %276 = vmatprep.subr.mxu0 0.0
      %277 = vmatpush1.msra.mxu0 0.0
      %278 = vmatprep.subr.mxu0 0.0
      %279 = vmatpush1.msra.mxu0 0.0
      %280 = vmatprep.subr.mxu0 0.0
      %281 = vmatpush1.msra.mxu0 0.0
      %282 = vmatprep.subr.mxu0 0.0
      %283 = vmatpush1.msra.mxu0 0.0
      %284 = vmatprep.subr.mxu0 0.0
      %285 = vmatpush1.msra.mxu0 0.0
      %286 = vmatprep.subr.mxu0 0.0
      %287 = vmatpush1.msra.mxu0 0.0
      %288 = vmatprep.subr.mxu0 0.0
      %289 = vmatpush1.msra.mxu0 0.0
      %290 = vmatprep.subr.mxu0 0.0
      %291 = vmatpush1.msra.mxu0 0.0
      %292 = vmatprep.subr.mxu0 0.0
      %293 = vmatpush1.msra.mxu0 0.0
      %294 = vmatprep.mubr.f32.mxu0 0.0
      %295 = vmatmul.mubr.f32.gmra.mrb[0].mxu0 %v151
      %v296 = vpop.f32.mrb[0].mxu0
      %v297 = vadd.f32 0.0, %v296
      %v298 = vpop.f32.mrb[0].mxu0
      %299 = vdwg.mxu0
      %v300 = vmul.f32 %v297, 0.125
      %v301 = vadd.f32 %v300, 1e-05
      %v302 = vrsqrt.pop %v301
      %v303 = vlaneseq
      %v304 = vshrl.u32 %v303, 7
      %v305 = vsub.s32 0, %v304
      %v306 = vrot.slane %v302, %v305
      %v307 = vmul.f32 %v228, %v306
      %v308 = vld [vmem:[%s3] sm:$0x1]
      %v310 = vlaneseq
      %v311 = vshrl.u32 %v310, 7
      %v312 = vsub.s32 0, %v311
      %v313 = vrot.slane %v308, %v312
      %v315 = vmul.f32 %v313, %v307
      %v316 = vld [vmem:[%s4] sm:$0x1]
      %v318 = vlaneseq
      %v319 = vshrl.u32 %v318, 7
      %v320 = vsub.s32 0, %v319
      %v321 = vrot.slane %v316, %v320
      %v323 = vadd.f32 %v315, %v321
      %v324 = vmax.f32 %v323, 0.0
      %v325 = vld [vmem:[%s5] sm:$0xff]
      %vm326 = vcmp.lt.u32.totalorder %v325, 3865470566
      %v327 = vmul.f32 %v324, 1.1111112
      %v328 = vsel %vm326, %v327, 0.0
      %329 = vst [vmem:[#allocation8] sm:$0xff] %v328
    $region41: #{tpu_custom_call.1} parent=1 // pred_fallthru
      _
    // Predicated region
    $region42: #{tpu_custom_call.1} parent=1 // pred_check
      _
    $region43: #{tpu_custom_call.1} parent=1 // pred_check_branch
      %331 = sbr.rel (0) target = $region45
    $region44: #{tpu_custom_call.1} parent=1 // pred_region
      %s333 = ssub.s32 128, 128
      %334 = vsyncadd [#allocation5], %s333
      %s336 = sshll.u32 [#allocation8], 4
      %s337 = int_to_ptr.vmem [resolvable:$true] %s336
      %339 = dma.vmem_to_hbm [thread:$0]  %s337, 128, %s6, [#allocation5]
    $region45: #{tpu_custom_call.1} parent=1 // pred_fallthru
      _
    // Predicated region
    $region46: #{tpu_custom_call.1} parent=1 // pred_check
      _
    $region47: #{tpu_custom_call.1} parent=1 // pred_check_branch
      %341 = sbr.rel (0) target = $region49
    $region48: #{tpu_custom_call.1} parent=1 // pred_region
      %342 = dma.done [#allocation5], 128
    $region49: #{tpu_custom_call.1} parent=1 // pred_fallthru
      _
    %343 = vsyncpa [#allocation4], 1
    %344 = vsyncpa [#allocation7], 1
    %345 = vsyncpa [#allocation5], 1

</llo_original>
